<compile_context>
chip_gen: v7x
topology: tpu7x:2x2x1
jax: 0.10.0
libtpu: 0.0.40
codegen_flags: <defaults>
</compile_context>

<pallas_src>
import functools
import math
from dataclasses import dataclass

import jax
import jax.numpy as jnp
import numpy as np
from jax.experimental import pallas as pl
from jax.experimental.pallas import tpu as pltpu


# ----------------------------- config ---------------------------------------


@dataclass
class YolosConfig:
    hidden_size: int = 32
    num_attention_heads: int = 4
    attention_probs_dropout_prob: float = 0.0   # eval mode -> identity
    qkv_bias: bool = True


# ----------------------------- Pallas kernel --------------------------------


def yolos_self_attention_kernel(x_ref, w_ref, b_ref, o_ref, *, num_heads):
    """Self-attention for one batch element.

    x_ref : (S, H)      f32 activations for this batch element
    w_ref : (H, 3H)     bf16 fused [Wq*scale | Wk | Wv]
    b_ref : (1, 3H)     f32  fused [bq*scale | bk | bv]
    o_ref : (S, H)      f32 merged-head context (lane-dense, single write)
    """
    S, H = x_ref.shape
    hd = H // num_heads

    xb = x_ref[...].astype(jnp.bfloat16)                           # (S, H)

    # One fused QKV projection: single 3H-lane-wide MXU matmul, f32 accum.
    qkv = jnp.dot(xb, w_ref[...],
                  preferred_element_type=jnp.float32) + b_ref[...]  # (S, 3H) f32
    qkv_b = qkv.astype(jnp.bfloat16)                                 # matmul operands only

    # Per-head attention (nh=4 statically unrolled).  These matmuls are
    # inherently MXU-starved at hd=8; not worth batching further.
    ctx_heads = []
    for h in range(num_heads):
        q = qkv_b[:, h * hd:(h + 1) * hd]                      # scale pre-folded
        k = qkv_b[:, H + h * hd: H + (h + 1) * hd]
        v = qkv_b[:, 2 * H + h * hd: 2 * H + (h + 1) * hd]

        scores = jnp.dot(q, k.T, preferred_element_type=jnp.float32)   # (S, S) f32

        # Numerically stable softmax, f32 math, EUP approx reciprocal.
        m = jnp.max(scores, axis=-1, keepdims=True)
        e = jnp.exp(scores - m)
        denom = jnp.sum(e, axis=-1, keepdims=True)
        probs = e * pl.reciprocal(denom, approx=True)
        # TODO(synk): attention-probs dropout / head_mask omitted (eval-mode
        # identity / None path of the reference module).

        ctx_heads.append(jnp.dot(probs.astype(jnp.bfloat16), v,
                                 preferred_element_type=jnp.float32))   # (S, hd)

    # Merge heads in-kernel (lane concat) -> single lane-dense (S, H) store.
    o_ref[...] = jnp.concatenate(ctx_heads, axis=-1).astype(o_ref.dtype)


# ----------------------------- wrapper ---------------------------------------


def prepare_attention_params(params, num_heads):
    """One-time parameter transform (NOT per-call work): fuse Q/K/V weights
    into a single (H, 3H) bf16 matrix and (1, 3H) f32 bias, with the
    1/sqrt(head_dim) attention scale folded into the query slice."""
    H = params["wq"].shape[0]
    hd = H // num_heads
    scale = 1.0 / math.sqrt(hd)

    w_qkv = jnp.concatenate(
        [params["wq"] * scale, params["wk"], params["wv"]], axis=1
    ).astype(jnp.bfloat16)                                   # (H, 3H)
    b_qkv = jnp.concatenate(
        [params["bq"] * scale, params["bk"], params["bv"]], axis=1
    ).astype(jnp.float32)                                    # (1, 3H)
    return {"w_qkv": w_qkv, "b_qkv": b_qkv}


def yolos_self_attention_pallas(hidden_states, prep, *, num_heads):
    B, S, H = hidden_states.shape

    kernel = functools.partial(yolos_self_attention_kernel, num_heads=num_heads)
    return pl.pallas_call(
        kernel,
        out_shape=jax.ShapeDtypeStruct((B, S, H), jnp.float32),
        grid=(B,),
        in_specs=[
            pl.BlockSpec((pl.Squeezed(), S, H), lambda b: (b, 0, 0)),   # x per batch
            pl.BlockSpec((H, 3 * H), lambda b: (0, 0)),                 # fused W (resident)
            pl.BlockSpec((1, 3 * H), lambda b: (0, 0)),                 # fused bias
        ],
        out_specs=pl.BlockSpec((pl.Squeezed(), S, H), lambda b: (b, 0, 0)),
        compiler_params=pltpu.CompilerParams(
            dimension_semantics=("parallel",)),                         # 2 TCs on v7x
    )(hidden_states, prep["w_qkv"], prep["b_qkv"])


# ----------------------------- pure-JAX reference (f32) ----------------------


def yolos_self_attention_ref(x, params, num_heads):
    B, S, H = x.shape
    hd = H // num_heads

    def proj(w, b):
        y = x @ w + b
        return y.reshape(B, S, num_heads, hd).transpose(0, 2, 1, 3)  # (B, nh, S, hd)

    q = proj(params["wq"], params["bq"])
    k = proj(params["wk"], params["bk"])
    v = proj(params["wv"], params["bv"])
    scores = jnp.einsum("bhqd,bhkd->bhqk", q, k) / math.sqrt(hd)
    probs = jax.nn.softmax(scores, axis=-1)
    ctx = jnp.einsum("bhqk,bhkd->bhqd", probs, v)
    return ctx.transpose(0, 2, 1, 3).reshape(B, S, H)


# ----------------------------- main ------------------------------------------


if __name__ == "__main__":
    cfg = YolosConfig()
    B, S = 2, 16
    H, nh = cfg.hidden_size, cfg.num_attention_heads

    key = jax.random.PRNGKey(0)
    kx, kwq, kwk, kwv, kbq, kbk, kbv = jax.random.split(key, 7)
    std = 0.02
    hidden_states = jax.random.normal(kx, (B, S, H), dtype=jnp.float32)
    params = {
        "wq": (jax.random.normal(kwq, (H, H)) * std).astype(jnp.float32),
        "wk": (jax.random.normal(kwk, (H, H)) * std).astype(jnp.float32),
        "wv": (jax.random.normal(kwv, (H, H)) * std).astype(jnp.float32),
        "bq": (jax.random.normal(kbq, (1, H)) * std).astype(jnp.float32),
        "bk": (jax.random.normal(kbk, (1, H)) * std).astype(jnp.float32),
        "bv": (jax.random.normal(kbv, (1, H)) * std).astype(jnp.float32),
    }

    prep = prepare_attention_params(params, nh)          # one-time transform

    out = yolos_self_attention_pallas(hidden_states, prep, num_heads=nh)
    out = jax.block_until_ready(out)

    ref = yolos_self_attention_ref(hidden_states, params, nh)
    ref = jax.block_until_ready(ref)

    # bf16 matmul operands + approx reciprocal give ~1e-3-level deviations vs
    # the f32 reference at these magnitudes.
    np.testing.assert_allclose(np.asarray(out), np.asarray(ref),
                               atol=2e-3, rtol=2e-2)
    print("KERNEL_OK")
</pallas_src>

<mosaic_0001>
module attributes {stable_mosaic.version = 11 : i64} {
  func.func @yolos_self_attention_kernel(%arg0: i32, %arg1: memref<1x16x32xf32, #tpu.memory_space<vmem>>, %arg2: memref<32x96xbf16, #tpu.memory_space<vmem>>, %arg3: memref<1x96xf32, #tpu.memory_space<vmem>>, %arg4: memref<1x16x32xf32, #tpu.memory_space<vmem>>) attributes {dimension_semantics = [#tpu.dimension_semantics<parallel>], iteration_bounds = array<i64: 2>, scalar_prefetch = 0 : i64, scratch_operands = 0 : i64, tpu.core_type = #tpu.core_type<tc>, window_params = [{transform_indices = @transform_0, window_bounds = array<i64: 1, 16, 32>}, {pipeline_mode = #tpu.pipeline_mode<synchronous>, transform_indices = @transform_1, window_bounds = array<i64: 32, 96>}, {pipeline_mode = #tpu.pipeline_mode<synchronous>, transform_indices = @transform_2, window_bounds = array<i64: 1, 96>}, {transform_indices = @transform_3, window_bounds = array<i64: 1, 16, 32>}]} {
    %c0 = arith.constant 0 : index
    %c0_0 = arith.constant 0 : index
    %c0_1 = arith.constant 0 : index
    %0 = vector.load %arg1[%c0, %c0_0, %c0_1] : memref<1x16x32xf32, #tpu.memory_space<vmem>>, vector<1x16x32xf32>
    %1 = vector.shape_cast %0 : vector<1x16x32xf32> to vector<16x32xf32>
    %2 = arith.truncf %1 : vector<16x32xf32> to vector<16x32xbf16>
    %c0_2 = arith.constant 0 : index
    %c0_3 = arith.constant 0 : index
    %3 = vector.load %arg2[%c0_2, %c0_3] : memref<32x96xbf16, #tpu.memory_space<vmem>>, vector<32x96xbf16>
    %cst = arith.constant dense<0.000000e+00> : vector<16x96xf32>
    %4 = tpu.matmul %2, %3, %cst {dimension_numbers = #tpu.dot_dimension_numbers<[1], [0], [0], [1], [0, 0, 1, 1], [], []>} : vector<16x32xbf16>, vector<32x96xbf16>, vector<16x96xf32> -> vector<16x96xf32>
    %c0_4 = arith.constant 0 : index
    %c0_5 = arith.constant 0 : index
    %5 = vector.load %arg3[%c0_4, %c0_5] : memref<1x96xf32, #tpu.memory_space<vmem>>, vector<1x96xf32>
    %6 = vector.broadcast %5 : vector<1x96xf32> to vector<16x96xf32>
    %7 = arith.addf %4, %6 : vector<16x96xf32>
    %8 = arith.truncf %7 : vector<16x96xf32> to vector<16x96xbf16>
    %9 = vector.extract_strided_slice %8 {offsets = [0, 0], sizes = [16, 8], strides = [1, 1]} : vector<16x96xbf16> to vector<16x8xbf16>
    %10 = vector.extract_strided_slice %8 {offsets = [0, 32], sizes = [16, 8], strides = [1, 1]} : vector<16x96xbf16> to vector<16x8xbf16>
    %11 = vector.extract_strided_slice %8 {offsets = [0, 64], sizes = [16, 8], strides = [1, 1]} : vector<16x96xbf16> to vector<16x8xbf16>
    %12 = tpu.transpose %10, [1, 0] : vector<16x8xbf16> -> vector<8x16xbf16>
    %cst_6 = arith.constant dense<0.000000e+00> : vector<16x16xf32>
    %13 = tpu.matmul %9, %12, %cst_6 {dimension_numbers = #tpu.dot_dimension_numbers<[1], [0], [0], [1], [0, 0, 1, 1], [], []>} : vector<16x8xbf16>, vector<8x16xbf16>, vector<16x16xf32> -> vector<16x16xf32>
    %cst_7 = arith.constant dense<0xFF800000> : vector<16xf32>
    %14 = vector.multi_reduction <maximumf>, %13, %cst_7 [1] : vector<16x16xf32> to vector<16xf32>
    %15 = vector.shape_cast %14 : vector<16xf32> to vector<16x1xf32>
    %16 = vector.broadcast %15 : vector<16x1xf32> to vector<16x16xf32>
    %17 = arith.subf %13, %16 : vector<16x16xf32>
    %18 = math.exp %17 : vector<16x16xf32>
    %cst_8 = arith.constant dense<0.000000e+00> : vector<16xf32>
    %19 = vector.multi_reduction <add>, %18, %cst_8 [1] : vector<16x16xf32> to vector<16xf32>
    %20 = vector.shape_cast %19 : vector<16xf32> to vector<16x1xf32>
    %21 = tpu.reciprocal %20 {approx = true} : vector<16x1xf32> -> vector<16x1xf32>
    %22 = vector.broadcast %21 : vector<16x1xf32> to vector<16x16xf32>
    %23 = arith.mulf %18, %22 : vector<16x16xf32>
    %24 = arith.truncf %23 : vector<16x16xf32> to vector<16x16xbf16>
    %cst_9 = arith.constant dense<0.000000e+00> : vector<16x8xf32>
    %25 = tpu.matmul %24, %11, %cst_9 {dimension_numbers = #tpu.dot_dimension_numbers<[1], [0], [0], [1], [0, 0, 1, 1], [], []>} : vector<16x16xbf16>, vector<16x8xbf16>, vector<16x8xf32> -> vector<16x8xf32>
    %26 = vector.extract_strided_slice %8 {offsets = [0, 8], sizes = [16, 8], strides = [1, 1]} : vector<16x96xbf16> to vector<16x8xbf16>
    %27 = vector.extract_strided_slice %8 {offsets = [0, 40], sizes = [16, 8], strides = [1, 1]} : vector<16x96xbf16> to vector<16x8xbf16>
    %28 = vector.extract_strided_slice %8 {offsets = [0, 72], sizes = [16, 8], strides = [1, 1]} : vector<16x96xbf16> to vector<16x8xbf16>
    %29 = tpu.transpose %27, [1, 0] : vector<16x8xbf16> -> vector<8x16xbf16>
    %cst_10 = arith.constant dense<0.000000e+00> : vector<16x16xf32>
    %30 = tpu.matmul %26, %29, %cst_10 {dimension_numbers = #tpu.dot_dimension_numbers<[1], [0], [0], [1], [0, 0, 1, 1], [], []>} : vector<16x8xbf16>, vector<8x16xbf16>, vector<16x16xf32> -> vector<16x16xf32>
    %cst_11 = arith.constant dense<0xFF800000> : vector<16xf32>
    %31 = vector.multi_reduction <maximumf>, %30, %cst_11 [1] : vector<16x16xf32> to vector<16xf32>
    %32 = vector.shape_cast %31 : vector<16xf32> to vector<16x1xf32>
    %33 = vector.broadcast %32 : vector<16x1xf32> to vector<16x16xf32>
    %34 = arith.subf %30, %33 : vector<16x16xf32>
    %35 = math.exp %34 : vector<16x16xf32>
    %cst_12 = arith.constant dense<0.000000e+00> : vector<16xf32>
    %36 = vector.multi_reduction <add>, %35, %cst_12 [1] : vector<16x16xf32> to vector<16xf32>
    %37 = vector.shape_cast %36 : vector<16xf32> to vector<16x1xf32>
    %38 = tpu.reciprocal %37 {approx = true} : vector<16x1xf32> -> vector<16x1xf32>
    %39 = vector.broadcast %38 : vector<16x1xf32> to vector<16x16xf32>
    %40 = arith.mulf %35, %39 : vector<16x16xf32>
    %41 = arith.truncf %40 : vector<16x16xf32> to vector<16x16xbf16>
    %cst_13 = arith.constant dense<0.000000e+00> : vector<16x8xf32>
    %42 = tpu.matmul %41, %28, %cst_13 {dimension_numbers = #tpu.dot_dimension_numbers<[1], [0], [0], [1], [0, 0, 1, 1], [], []>} : vector<16x16xbf16>, vector<16x8xbf16>, vector<16x8xf32> -> vector<16x8xf32>
    %43 = vector.extract_strided_slice %8 {offsets = [0, 16], sizes = [16, 8], strides = [1, 1]} : vector<16x96xbf16> to vector<16x8xbf16>
    %44 = vector.extract_strided_slice %8 {offsets = [0, 48], sizes = [16, 8], strides = [1, 1]} : vector<16x96xbf16> to vector<16x8xbf16>
    %45 = vector.extract_strided_slice %8 {offsets = [0, 80], sizes = [16, 8], strides = [1, 1]} : vector<16x96xbf16> to vector<16x8xbf16>
    %46 = tpu.transpose %44, [1, 0] : vector<16x8xbf16> -> vector<8x16xbf16>
    %cst_14 = arith.constant dense<0.000000e+00> : vector<16x16xf32>
    %47 = tpu.matmul %43, %46, %cst_14 {dimension_numbers = #tpu.dot_dimension_numbers<[1], [0], [0], [1], [0, 0, 1, 1], [], []>} : vector<16x8xbf16>, vector<8x16xbf16>, vector<16x16xf32> -> vector<16x16xf32>
    %cst_15 = arith.constant dense<0xFF800000> : vector<16xf32>
    %48 = vector.multi_reduction <maximumf>, %47, %cst_15 [1] : vector<16x16xf32> to vector<16xf32>
    %49 = vector.shape_cast %48 : vector<16xf32> to vector<16x1xf32>
    %50 = vector.broadcast %49 : vector<16x1xf32> to vector<16x16xf32>
    %51 = arith.subf %47, %50 : vector<16x16xf32>
    %52 = math.exp %51 : vector<16x16xf32>
    %cst_16 = arith.constant dense<0.000000e+00> : vector<16xf32>
    %53 = vector.multi_reduction <add>, %52, %cst_16 [1] : vector<16x16xf32> to vector<16xf32>
    %54 = vector.shape_cast %53 : vector<16xf32> to vector<16x1xf32>
    %55 = tpu.reciprocal %54 {approx = true} : vector<16x1xf32> -> vector<16x1xf32>
    %56 = vector.broadcast %55 : vector<16x1xf32> to vector<16x16xf32>
    %57 = arith.mulf %52, %56 : vector<16x16xf32>
    %58 = arith.truncf %57 : vector<16x16xf32> to vector<16x16xbf16>
    %cst_17 = arith.constant dense<0.000000e+00> : vector<16x8xf32>
    %59 = tpu.matmul %58, %45, %cst_17 {dimension_numbers = #tpu.dot_dimension_numbers<[1], [0], [0], [1], [0, 0, 1, 1], [], []>} : vector<16x16xbf16>, vector<16x8xbf16>, vector<16x8xf32> -> vector<16x8xf32>
    %60 = vector.extract_strided_slice %8 {offsets = [0, 24], sizes = [16, 8], strides = [1, 1]} : vector<16x96xbf16> to vector<16x8xbf16>
    %61 = vector.extract_strided_slice %8 {offsets = [0, 56], sizes = [16, 8], strides = [1, 1]} : vector<16x96xbf16> to vector<16x8xbf16>
    %62 = vector.extract_strided_slice %8 {offsets = [0, 88], sizes = [16, 8], strides = [1, 1]} : vector<16x96xbf16> to vector<16x8xbf16>
    %63 = tpu.transpose %61, [1, 0] : vector<16x8xbf16> -> vector<8x16xbf16>
    %cst_18 = arith.constant dense<0.000000e+00> : vector<16x16xf32>
    %64 = tpu.matmul %60, %63, %cst_18 {dimension_numbers = #tpu.dot_dimension_numbers<[1], [0], [0], [1], [0, 0, 1, 1], [], []>} : vector<16x8xbf16>, vector<8x16xbf16>, vector<16x16xf32> -> vector<16x16xf32>
    %cst_19 = arith.constant dense<0xFF800000> : vector<16xf32>
    %65 = vector.multi_reduction <maximumf>, %64, %cst_19 [1] : vector<16x16xf32> to vector<16xf32>
    %66 = vector.shape_cast %65 : vector<16xf32> to vector<16x1xf32>
    %67 = vector.broadcast %66 : vector<16x1xf32> to vector<16x16xf32>
    %68 = arith.subf %64, %67 : vector<16x16xf32>
    %69 = math.exp %68 : vector<16x16xf32>
    %cst_20 = arith.constant dense<0.000000e+00> : vector<16xf32>
    %70 = vector.multi_reduction <add>, %69, %cst_20 [1] : vector<16x16xf32> to vector<16xf32>
    %71 = vector.shape_cast %70 : vector<16xf32> to vector<16x1xf32>
    %72 = tpu.reciprocal %71 {approx = true} : vector<16x1xf32> -> vector<16x1xf32>
    %73 = vector.broadcast %72 : vector<16x1xf32> to vector<16x16xf32>
    %74 = arith.mulf %69, %73 : vector<16x16xf32>
    %75 = arith.truncf %74 : vector<16x16xf32> to vector<16x16xbf16>
    %cst_21 = arith.constant dense<0.000000e+00> : vector<16x8xf32>
    %76 = tpu.matmul %75, %62, %cst_21 {dimension_numbers = #tpu.dot_dimension_numbers<[1], [0], [0], [1], [0, 0, 1, 1], [], []>} : vector<16x16xbf16>, vector<16x8xbf16>, vector<16x8xf32> -> vector<16x8xf32>
    %77 = tpu.concatenate %25, %42, %59, %76 in 1 : vector<16x8xf32>, vector<16x8xf32>, vector<16x8xf32>, vector<16x8xf32> -> vector<16x32xf32>
    %c0_22 = arith.constant 0 : index
    %c0_23 = arith.constant 0 : index
    %c0_24 = arith.constant 0 : index
    %78 = vector.load %arg4[%c0_22, %c0_23, %c0_24] : memref<1x16x32xf32, #tpu.memory_space<vmem>>, vector<1x16x32xf32>
    %79 = vector.shape_cast %78 : vector<1x16x32xf32> to vector<16x32xf32>
    %80 = vector.shape_cast %77 : vector<16x32xf32> to vector<1x16x32xf32>
    tpu.vector_store %arg4[%c0_22, %c0_23, %c0_24], %80 {strides = array<i32>} : memref<1x16x32xf32, #tpu.memory_space<vmem>>, vector<1x16x32xf32>,
    return
  }
  func.func @transform_0(%arg0: i32) -> (i32, i32, i32) {
    %c0_i32 = arith.constant 0 : i32
    %c0_i32_0 = arith.constant 0 : i32
    %c0_i32_1 = arith.constant 0 : i32
    return %arg0, %c0_i32, %c0_i32_0 : i32, i32, i32
  }
  func.func @transform_1(%arg0: i32) -> (i32, i32) {
    %c0_i32 = arith.constant 0 : i32
    %c0_i32_0 = arith.constant 0 : i32
    %c0_i32_1 = arith.constant 0 : i32
    return %c0_i32, %c0_i32_0 : i32, i32
  }
  func.func @transform_2(%arg0: i32) -> (i32, i32) {
    %c0_i32 = arith.constant 0 : i32
    %c0_i32_0 = arith.constant 0 : i32
    %c0_i32_1 = arith.constant 0 : i32
    return %c0_i32, %c0_i32_0 : i32, i32
  }
  func.func @transform_3(%arg0: i32) -> (i32, i32, i32) {
    %c0_i32 = arith.constant 0 : i32
    %c0_i32_0 = arith.constant 0 : i32
    %c0_i32_1 = arith.constant 0 : i32
    return %arg0, %c0_i32, %c0_i32_0 : i32, i32, i32
  }
}

</mosaic_0001>

<llo_original>
// kernel: tpu_custom_call.1
$region0: #{tpu_custom_call.1}
  #allocation0 [shape = 'u32[]', space=smem, size = 0x4, offset = 0x4, fixed_abs, tag = 'smem constant byte address 0x4 - core index']
  #allocation1 [shape = 'u32[144,128]{1,0:T(1,128)}', space=vmem, size = 0x12000, scoped, tag = 'internal scratch']
  %s0 = inlined_call_operand.hbm [shape: f32[2,16,32], index: 0, kind: input, shape index: {}]
  %s1 = inlined_call_operand.hbm [shape: bf16[32,96], index: 1, kind: input, shape index: {}]
  %s2 = inlined_call_operand.vmem [shape: f32[1,96], index: 2, kind: input, shape index: {}]
  %s3 = inlined_call_operand.hbm [shape: f32[2,16,32], index: 3, kind: output, shape index: {}]
  %s4 = sld [smem:[#allocation0]]
  $region53: #{tpu_custom_call.1} parent=0
    _
  %s6 = ssub.s32 1, %s4
  %s7 = scalar_select 0, %s6, %s4
  $region1: #{tpu_custom_call.1} parent=0
    #allocation2 [shape = 'u8[16384]{0}', space=vmem, size = 0x4000, scoped, tag = 'input window, operand 0']
    #allocation3 [shape = 's32[2]{0}', space=sflag, size = 0x8, scoped, tag = 'scoped memory for tpu_custom_call.1']
    #allocation4 [shape = 's32[2]{0}', space=sflag, size = 0x8, scoped, tag = 'scoped memory for tpu_custom_call.1']
    #allocation5 [shape = 'u8[8192]{0}', space=vmem, size = 0x2000, scoped, tag = 'input window, operand 1, single buffered']
    #allocation6 [shape = 's32[1]{0}', space=sflag, size = 0x4, scoped, tag = 'scoped memory for tpu_custom_call.1']
    #allocation7 [shape = 'u8[16384]{0}', space=vmem, size = 0x4000, scoped, tag = 'output window, operand 0']
    %8 = vsyncpa [#allocation3], 0
    %s9 = scalar_lea.sflag [#allocation3], 1
    %10 = vsyncpa %s9, 0
    %11 = vsyncpa [#allocation6], 0
    %12 = vsyncpa [#allocation4], 0
    %s13 = scalar_lea.sflag [#allocation4], 1
    %14 = vsyncpa %s13, 0
    loop: start=0, step=1, limit=4
    $region2: #{tpu_custom_call.1} parent=1 // loop_pre_header
      _
    $region3: #{tpu_custom_call.1} parent=1 // loop_header
      %s16 = sphi 0, %s20
      %p17 = scmp.ge.s32.totalorder %s16, 4
      %s26 = sphi 0, %s28
      %s29 = sphi 0, %s26
      %s30 = sphi 0, %s29
      %s46 = sphi 0, %s30
      %s50 = sphi 0, %s50
      %s52 = sphi 0, %s50
      %s53 = sphi 0, %s52
      %s67 = sphi 0, %s53
      %s71 = sphi 0, %s71
      %s73 = sphi 0, %s71
      %s74 = sphi 0, %s73
      %s88 = sphi 0, %s74
      %s94 = sphi 0, %s96
      %s97 = sphi 0, %s94
      %s98 = sphi 0, %s97
      %s114 = sphi 0, %s98
    $region4: #{tpu_custom_call.1} parent=1 // loop_header_branch
      %19 = sbr.rel (%p17) target = $region8
    $region5: #{tpu_custom_call.1} parent=1 // loop_body
      %s21 = ssub.s32 %s16, 1
      %s22 = ssub.s32 %s16, 2
      %s23 = sadd.s32 %s16, 1
      %s24 = ssub.s32 %s16, %s23
      %p25 = scmp.eq.s32.totalorder %s24, 0
      %s27 = sadd.s32 %s26, 1
      %s28 = scalar_select %p25, %s26, %s27
      %p31 = pneg %p25
      %p32 = scmp.eq.s32.totalorder %s16, 1
      %p33 = por %p31, %p32
      %p34 = scmp.ne.s32.totalorder %s26, %s29
      %p35 = scmp.eq.s32.totalorder %s16, 0
      %p36 = por %p34, %p35
      %p37 = scmp.ne.s32.totalorder %s26, %s29
      %p38 = scmp.eq.s32.totalorder %s21, 1
      %p39 = por %p37, %p38
      %p40 = scmp.ne.s32.totalorder %s29, %s30
      %p41 = scmp.eq.s32.totalorder %s21, 0
      %p42 = por %p40, %p41
      %p43 = scmp.ne.s32.totalorder %s29, %s30
      %p44 = scmp.eq.s32.totalorder %s22, 1
      %p45 = por %p43, %p44
      %p47 = scmp.ne.s32.totalorder %s30, %s46
      %p48 = scmp.eq.s32.totalorder %s22, 0
      %p49 = por %p47, %p48
      %s51 = sadd.s32 %s50, 1
      %p54 = scmp.eq.s32.totalorder %s16, 1
      %p55 = scmp.ne.s32.totalorder %s50, %s52
      %p56 = scmp.eq.s32.totalorder %s16, 0
      %p57 = por %p55, %p56
      %p58 = scmp.ne.s32.totalorder %s50, %s52
      %p59 = scmp.eq.s32.totalorder %s21, 1
      %p60 = por %p58, %p59
      %p61 = scmp.ne.s32.totalorder %s52, %s53
      %p62 = scmp.eq.s32.totalorder %s21, 0
      %p63 = por %p61, %p62
      %p64 = scmp.ne.s32.totalorder %s52, %s53
      %p65 = scmp.eq.s32.totalorder %s22, 1
      %p66 = por %p64, %p65
      %p68 = scmp.ne.s32.totalorder %s53, %s67
      %p69 = scmp.eq.s32.totalorder %s22, 0
      %p70 = por %p68, %p69
      %s72 = sadd.s32 %s71, 1
      %p75 = scmp.eq.s32.totalorder %s16, 1
      %p76 = scmp.ne.s32.totalorder %s71, %s73
      %p77 = scmp.eq.s32.totalorder %s16, 0
      %p78 = por %p76, %p77
      %p79 = scmp.ne.s32.totalorder %s71, %s73
      %p80 = scmp.eq.s32.totalorder %s21, 1
      %p81 = por %p79, %p80
      %p82 = scmp.ne.s32.totalorder %s73, %s74
      %p83 = scmp.eq.s32.totalorder %s21, 0
      %p84 = por %p82, %p83
      %p85 = scmp.ne.s32.totalorder %s73, %s74
      %p86 = scmp.eq.s32.totalorder %s22, 1
      %p87 = por %p85, %p86
      %p89 = scmp.ne.s32.totalorder %s74, %s88
      %p90 = scmp.eq.s32.totalorder %s22, 0
      %p91 = por %p89, %p90
      %s92 = ssub.s32 %s16, %s23
      %p93 = scmp.eq.s32.totalorder %s92, 0
      %s95 = sadd.s32 %s94, 1
      %s96 = scalar_select %p93, %s94, %s95
      %p99 = pneg %p93
      %p100 = scmp.eq.s32.totalorder %s16, 1
      %p101 = por %p99, %p100
      %p102 = scmp.ne.s32.totalorder %s94, %s97
      %p103 = scmp.eq.s32.totalorder %s16, 0
      %p104 = por %p102, %p103
      %p105 = scmp.ne.s32.totalorder %s94, %s97
      %p106 = scmp.eq.s32.totalorder %s21, 1
      %p107 = por %p105, %p106
      %p108 = scmp.ne.s32.totalorder %s97, %s98
      %p109 = scmp.eq.s32.totalorder %s21, 0
      %p110 = por %p108, %p109
      %p111 = scmp.ne.s32.totalorder %s97, %s98
      %p112 = scmp.eq.s32.totalorder %s22, 1
      %p113 = por %p111, %p112
      %p115 = scmp.ne.s32.totalorder %s98, %s114
      %p116 = scmp.eq.s32.totalorder %s22, 0
      %p117 = por %p115, %p116
      %p118 = scmp.le.s32.totalorder 1, %s16
      %p119 = scmp.lt.s32.totalorder %s16, 3
      %p120 = pnand %p118, %p119
      %p121 = pneg %p120
      // Predicated region
      $region9: #{tpu_custom_call.1} parent=5 // pred_check
        _
      $region10: #{tpu_custom_call.1} parent=5 // pred_check_branch
        %123 = sbr.rel (%p120) target = $region12
      $region11: #{tpu_custom_call.1} parent=5 // pred_region
        %s124 = ssub.s32 %s16, 1
        // Predicated region
        $region13: #{tpu_custom_call.1} parent=11 // pred_check
          %p125 = pneg %p63
        $region14: #{tpu_custom_call.1} parent=11 // pred_check_branch
          %127 = sbr.rel (%p125) target = $region16
        $region15: #{tpu_custom_call.1} parent=11 // pred_region
          %s129 = ssub.s32 256, 256
          %130 = vsyncadd [#allocation6], %s129
          %s131 = sshll.u32 [#allocation5], 4
          %s132 = int_to_ptr.vmem [resolvable:$true] %s131
          %137 = dma.hbm_to_vmem [thread:$0]  %s1, 256, %s132, [#allocation6], 64, 64, 4
        $region16: #{tpu_custom_call.1} parent=11 // pred_fallthru
          _
        // Predicated region
        $region17: #{tpu_custom_call.1} parent=11 // pred_check
          %p138 = pneg %p84
        $region18: #{tpu_custom_call.1} parent=11 // pred_check_branch
          %140 = sbr.rel (%p138) target = $region20
        $region19: #{tpu_custom_call.1} parent=11 // pred_region
          _
        $region20: #{tpu_custom_call.1} parent=11 // pred_fallthru
          _
      $region12: #{tpu_custom_call.1} parent=5 // pred_fallthru
        _
      %p141 = scmp.lt.s32.totalorder %s16, 2
      // Predicated region
      $region21: #{tpu_custom_call.1} parent=5 // pred_check
        %p142 = pneg %p141
      $region22: #{tpu_custom_call.1} parent=5 // pred_check_branch
        %144 = sbr.rel (%p142) target = $region24
      $region23: #{tpu_custom_call.1} parent=5 // pred_region
        // Predicated region
        $region25: #{tpu_custom_call.1} parent=23 // pred_check
          %p145 = pneg %p36
        $region26: #{tpu_custom_call.1} parent=23 // pred_check_branch
          %147 = sbr.rel (%p145) target = $region28
        $region27: #{tpu_custom_call.1} parent=23 // pred_region
          %s148 = sand.u32 %s26, 1
          %s149 = scalar_lea.sflag [#allocation3], %s148
          %s150 = sand.u32 %s26, 1
          %s151 = smul.addr %s150, 16
          %s152 = scalar_lea.vmem [#allocation2], %s151
          %s154 = ssub.s32 256, 256
          %155 = vsyncadd %s149, %s154
          %s156 = smul.addr %s16, 2
          %s157 = smul.addr %s156, 128
          %s158 = scalar_lea.hbm %s0, %s157
          %s159 = sshll.u32 %s152, 4
          %s160 = int_to_ptr.vmem [resolvable:$true] %s159
          %165 = dma.hbm_to_vmem [thread:$0]  %s158, 256, %s160, %s149, 128, 128, 8
        $region28: #{tpu_custom_call.1} parent=23 // pred_fallthru
          _
      $region24: #{tpu_custom_call.1} parent=5 // pred_fallthru
        _
      %p166 = scmp.le.s32.totalorder 1, %s16
      %p167 = scmp.lt.s32.totalorder %s16, 3
      %p168 = pnand %p166, %p167
      %p169 = pneg %p168
      // Predicated region
      $region29: #{tpu_custom_call.1} parent=5 // pred_check
        _
      $region30: #{tpu_custom_call.1} parent=5 // pred_check_branch
        %171 = sbr.rel (%p168) target = $region32
      $region31: #{tpu_custom_call.1} parent=5 // pred_region
        %s172 = ssub.s32 %s16, 1
        %s173 = sand.u32 %s29, 1
        %s174 = scalar_lea.sflag [#allocation3], %s173
        %s175 = sand.u32 %s29, 1
        %s176 = smul.addr %s175, 16
        %s177 = scalar_lea.vmem [#allocation2], %s176
        // Predicated region
        $region33: #{tpu_custom_call.1} parent=31 // pred_check
          %p178 = pneg %p42
        $region34: #{tpu_custom_call.1} parent=31 // pred_check_branch
          %180 = sbr.rel (%p178) target = $region36
        $region35: #{tpu_custom_call.1} parent=31 // pred_region
          %181 = dma.done %s174, 256
        $region36: #{tpu_custom_call.1} parent=31 // pred_fallthru
          _
        // Predicated region
        $region37: #{tpu_custom_call.1} parent=31 // pred_check
          %p182 = pneg %p63
        $region38: #{tpu_custom_call.1} parent=31 // pred_check_branch
          %184 = sbr.rel (%p182) target = $region40
        $region39: #{tpu_custom_call.1} parent=31 // pred_region
          %185 = dma.done [#allocation6], 256
        $region40: #{tpu_custom_call.1} parent=31 // pred_fallthru
          _
        %s186 = sand.u32 %s29, 1
        %s187 = scalar_lea.sflag [#allocation3], %s186
        %s188 = sand.u32 %s29, 1
        %s189 = smul.addr %s188, 16
        %s190 = scalar_lea.vmem [#allocation2], %s189
        %p191 = pneg %p42
        %p192 = pneg %p39
        %p193 = pneg %p63
        %p194 = pneg %p60
        %p195 = pneg %p84
        %p196 = pneg %p81
        %p197 = pneg %p110
        %p198 = pneg %p107
        %s199 = sand.u32 %s97, 1
        %s200 = scalar_lea.sflag [#allocation4], %s199
        %s201 = sand.u32 %s97, 1
        %s202 = smul.addr %s201, 16
        %s203 = scalar_lea.vmem [#allocation7], %s202
        %v205 = vld [vmem:[%s177] sm:$0xff]
        %v206 = vld [vmem:[%s177 + $0x8] sm:$0xff]
        %v207 = vpack.c.bf16 %v206, %v205
        %v208 = vld [vmem:[#allocation5] sm:$0xf]
        %v209 = vld [vmem:[#allocation5 + $0x4] sm:$0xf]
        %v210 = vld [vmem:[#allocation5 + $0x8] sm:$0xf]
        %v211 = vld [vmem:[#allocation5 + $0xc] sm:$0xf]
        %v212 = vld [vmem:[%s2] sm:$0x1]
        %v214 = vlaneseq
        %v215 = vshrl.u32 %v214, 7
        %v216 = vsub.s32 0, %v215
        %v217 = vrot.slane %v212, %v216
        %v223 = vunpack.c.l.b16 %v208
        %v224 = vunpack.c.l.b16 %v209
        %v225 = vunpack.c.l.b16 %v210
        %v226 = vunpack.c.l.b16 %v211
        %v227 = vpack.c.b16 %v224, %v223
        %v228 = vpack.c.b16 %v226, %v225
        %vm231 = vcmask 261120
        %v233 = vsel %vm231, %v207, 0
        %235 = vmatprep.subr.bf16.mxu0 0
        %236 = vmatpush1.bf16.msra.mxu0 %v227
        %237 = vmatprep.subr.bf16.mxu0 0
        %238 = vmatpush1.bf16.msra.mxu0 %v228
        %239 = vmatprep.subr.bf16.mxu0 0
        %240 = vmatpush1.bf16.msra.mxu0 0
        %241 = vmatprep.subr.bf16.mxu0 0
        %242 = vmatpush1.bf16.msra.mxu0 0
        %243 = vmatprep.subr.bf16.mxu0 0
        %244 = vmatpush1.bf16.msra.mxu0 0
        %245 = vmatprep.subr.bf16.mxu0 0
        %246 = vmatpush1.bf16.msra.mxu0 0
        %247 = vmatprep.subr.bf16.mxu0 0
        %248 = vmatpush1.bf16.msra.mxu0 0
        %249 = vmatprep.subr.bf16.mxu0 0
        %250 = vmatpush1.bf16.msra.mxu0 0
        %251 = vmatprep.subr.bf16.mxu0 0
        %252 = vmatpush1.bf16.msra.mxu0 0
        %253 = vmatprep.subr.bf16.mxu0 0
        %254 = vmatpush1.bf16.msra.mxu0 0
        %255 = vmatprep.subr.bf16.mxu0 0
        %256 = vmatpush1.bf16.msra.mxu0 0
        %257 = vmatprep.subr.bf16.mxu0 0
        %258 = vmatpush1.bf16.msra.mxu0 0
        %259 = vmatprep.subr.bf16.mxu0 0
        %260 = vmatpush1.bf16.msra.mxu0 0
        %261 = vmatprep.subr.bf16.mxu0 0
        %262 = vmatpush1.bf16.msra.mxu0 0
        %263 = vmatprep.subr.bf16.mxu0 0
        %264 = vmatpush1.bf16.msra.mxu0 0
        %265 = vmatprep.subr.bf16.mxu0 0
        %266 = vmatpush1.bf16.msra.mxu0 0
        %267 = vmatprep.mubr.bf16.mxu0 0
        %268 = vmatmul.mubr.bf16.gmra.mrb[0].mxu0 %v233
        %v269 = vpop.f32.mrb[0].mxu0
        %v270 = vadd.f32 %v217, %v269
        %v271 = vpop.f32.mrb[0].mxu0
        %v272 = vpop.f32.mrb[0].mxu0
        %v273 = vadd.f32 %v217, %v272
        %v274 = vpop.f32.mrb[0].mxu0
        %275 = vdwg.mxu0
        %v276 = vpack.c.bf16 %v273, %v270
        %278 = vrot.lane.b32.xlu0 %v276, 96
        %v279 = vpop.permute.xlu0 %278
        %vm280 = vcmask 64512
        %v282 = vsel %vm280, %v276, 0
        %v285 = vsel %vm280, %v279, 0
        %287 = vmatprep.subr.bf16.mxu0 0
        %288 = vmatpush1.bf16.xpose.msra.mxu0 %v285
        %289 = vmatprep.subr.bf16.mxu0 0
        %290 = vmatpush1.bf16.xpose.msra.mxu0 0
        %291 = vmatprep.subr.bf16.mxu0 0
        %292 = vmatpush1.bf16.xpose.msra.mxu0 0
        %293 = vmatprep.subr.bf16.mxu0 0
        %294 = vmatpush1.bf16.xpose.msra.mxu0 0
        %295 = vmatprep.subr.bf16.mxu0 0
        %296 = vmatpush1.bf16.xpose.msra.mxu0 0
        %297 = vmatprep.subr.bf16.mxu0 0
        %298 = vmatpush1.bf16.xpose.msra.mxu0 0
        %299 = vmatprep.subr.bf16.mxu0 0
        %300 = vmatpush1.bf16.xpose.msra.mxu0 0
        %301 = vmatprep.subr.bf16.mxu0 0
        %302 = vmatpush1.bf16.xpose.msra.mxu0 0
        %303 = vmatprep.subr.bf16.mxu0 0
        %304 = vmatpush1.bf16.xpose.msra.mxu0 0
        %305 = vmatprep.subr.bf16.mxu0 0
        %306 = vmatpush1.bf16.xpose.msra.mxu0 0
        %307 = vmatprep.subr.bf16.mxu0 0
        %308 = vmatpush1.bf16.xpose.msra.mxu0 0
        %309 = vmatprep.subr.bf16.mxu0 0
        %310 = vmatpush1.bf16.xpose.msra.mxu0 0
        %311 = vmatprep.subr.bf16.mxu0 0
        %312 = vmatpush1.bf16.xpose.msra.mxu0 0
        %313 = vmatprep.subr.bf16.mxu0 0
        %314 = vmatpush1.bf16.xpose.msra.mxu0 0
        %315 = vmatprep.subr.bf16.mxu0 0
        %316 = vmatpush1.bf16.xpose.msra.mxu0 0
        %317 = vmatprep.subr.bf16.mxu0 0
        %318 = vmatpush1.bf16.xpose.msra.mxu0 0
        %319 = vmatprep.mubr.bf16.mxu0 0
        %320 = vmatmul.mubr.bf16.gmra.mrb[0].mxu0 %v282
        %v321 = vpop.f32.mrb[0].mxu0
        %v322 = vadd.f32 0.0, %v321
        %v323 = vpop.f32.mrb[0].mxu0
        %v324 = vpop.f32.mrb[0].mxu0
        %v325 = vadd.f32 0.0, %v324
        %v326 = vpop.f32.mrb[0].mxu0
        %327 = vdwg.mxu0
        %vm328 = vcmask 130048
        %v329 = vsel %vm328, %v322, -inf
        %330 = vmax.xlane.f32.xlu0 %v329
        %v331 = vpop.xlane.xlu0 %330
        %v332 = vsel %vm328, %v325, -inf
        %333 = vmax.xlane.f32.xlu0 %v332
        %v334 = vpop.xlane.xlu0 %333
        %v335 = vsub.f32 %v322, %v331
        %v336 = vsub.f32 %v325, %v334
        %v337 = vmul.f32 %v335, 1.442695
        %v338 = vpow.pop %v337
        %v339 = vmul.f32 %v336, 1.442695
        %v340 = vpow.pop %v339
        %v341 = vsel %vm328, %v338, 0.0
        %342 = vadd.xlane.f32.xlu0 %v341
        %v343 = vpop.xlane.xlu0 %342
        %v344 = vsel %vm328, %v340, 0.0
        %345 = vadd.xlane.f32.xlu0 %v344
        %v346 = vpop.xlane.xlu0 %345
        %v347 = vrcp.pop %v343
        %v348 = vrcp.pop %v346
        %v349 = vmul.f32 %v338, %v347
        %v350 = vmul.f32 %v340, %v348
        %v351 = vpack.c.bf16 %v350, %v349
        %352 = vrot.lane.b32.xlu0 %v276, 64
        %v353 = vpop.permute.xlu0 %352
        %v356 = vsel %vm328, %v351, 0
        %358 = vmatprep.subr.bf16.mxu0 0
        %359 = vmatpush1.bf16.msra.mxu0 %v353
        %360 = vmatprep.subr.bf16.mxu0 0
        %361 = vmatpush1.bf16.msra.mxu0 0
        %362 = vmatprep.subr.bf16.mxu0 0
        %363 = vmatpush1.bf16.msra.mxu0 0
        %364 = vmatprep.subr.bf16.mxu0 0
        %365 = vmatpush1.bf16.msra.mxu0 0
        %366 = vmatprep.subr.bf16.mxu0 0
        %367 = vmatpush1.bf16.msra.mxu0 0
        %368 = vmatprep.subr.bf16.mxu0 0
        %369 = vmatpush1.bf16.msra.mxu0 0
        %370 = vmatprep.subr.bf16.mxu0 0
        %371 = vmatpush1.bf16.msra.mxu0 0
        %372 = vmatprep.subr.bf16.mxu0 0
        %373 = vmatpush1.bf16.msra.mxu0 0
        %374 = vmatprep.subr.bf16.mxu0 0
        %375 = vmatpush1.bf16.msra.mxu0 0
        %376 = vmatprep.subr.bf16.mxu0 0
        %377 = vmatpush1.bf16.msra.mxu0 0
        %378 = vmatprep.subr.bf16.mxu0 0
        %379 = vmatpush1.bf16.msra.mxu0 0
        %380 = vmatprep.subr.bf16.mxu0 0
        %381 = vmatpush1.bf16.msra.mxu0 0
        %382 = vmatprep.subr.bf16.mxu0 0
        %383 = vmatpush1.bf16.msra.mxu0 0
        %384 = vmatprep.subr.bf16.mxu0 0
        %385 = vmatpush1.bf16.msra.mxu0 0
        %386 = vmatprep.subr.bf16.mxu0 0
        %387 = vmatpush1.bf16.msra.mxu0 0
        %388 = vmatprep.subr.bf16.mxu0 0
        %389 = vmatpush1.bf16.msra.mxu0 0
        %390 = vmatprep.mubr.bf16.mxu0 0
        %391 = vmatmul.mubr.bf16.gmra.mrb[0].mxu0 %v356
        %v392 = vpop.f32.mrb[0].mxu0
        %v393 = vadd.f32 0.0, %v392
        %v394 = vpop.f32.mrb[0].mxu0
        %v395 = vpop.f32.mrb[0].mxu0
        %v396 = vadd.f32 0.0, %v395
        %v397 = vpop.f32.mrb[0].mxu0
        %398 = vdwg.mxu0
        %399 = vrot.lane.b32.xlu0 %v276, 120
        %v400 = vpop.permute.xlu0 %399
        %401 = vrot.lane.b32.xlu0 %v276, 88
        %v402 = vpop.permute.xlu0 %401
        %v404 = vsel %vm280, %v400, 0
        %v407 = vsel %vm280, %v402, 0
        %409 = vmatprep.subr.bf16.mxu0 0
        %410 = vmatpush1.bf16.xpose.msra.mxu0 %v407
        %411 = vmatprep.subr.bf16.mxu0 0
        %412 = vmatpush1.bf16.xpose.msra.mxu0 0
        %413 = vmatprep.subr.bf16.mxu0 0
        %414 = vmatpush1.bf16.xpose.msra.mxu0 0
        %415 = vmatprep.subr.bf16.mxu0 0
        %416 = vmatpush1.bf16.xpose.msra.mxu0 0
        %417 = vmatprep.subr.bf16.mxu0 0
        %418 = vmatpush1.bf16.xpose.msra.mxu0 0
        %419 = vmatprep.subr.bf16.mxu0 0
        %420 = vmatpush1.bf16.xpose.msra.mxu0 0
        %421 = vmatprep.subr.bf16.mxu0 0
        %422 = vmatpush1.bf16.xpose.msra.mxu0 0
        %423 = vmatprep.subr.bf16.mxu0 0
        %424 = vmatpush1.bf16.xpose.msra.mxu0 0
        %425 = vmatprep.subr.bf16.mxu0 0
        %426 = vmatpush1.bf16.xpose.msra.mxu0 0
        %427 = vmatprep.subr.bf16.mxu0 0
        %428 = vmatpush1.bf16.xpose.msra.mxu0 0
        %429 = vmatprep.subr.bf16.mxu0 0
        %430 = vmatpush1.bf16.xpose.msra.mxu0 0
        %431 = vmatprep.subr.bf16.mxu0 0
        %432 = vmatpush1.bf16.xpose.msra.mxu0 0
        %433 = vmatprep.subr.bf16.mxu0 0
        %434 = vmatpush1.bf16.xpose.msra.mxu0 0
        %435 = vmatprep.subr.bf16.mxu0 0
        %436 = vmatpush1.bf16.xpose.msra.mxu0 0
        %437 = vmatprep.subr.bf16.mxu0 0
        %438 = vmatpush1.bf16.xpose.msra.mxu0 0
        %439 = vmatprep.subr.bf16.mxu0 0
        %440 = vmatpush1.bf16.xpose.msra.mxu0 0
        %441 = vmatprep.mubr.bf16.mxu0 0
        %442 = vmatmul.mubr.bf16.gmra.mrb[0].mxu0 %v404
        %v443 = vpop.f32.mrb[0].mxu0
        %v444 = vadd.f32 0.0, %v443
        %v445 = vpop.f32.mrb[0].mxu0
        %v446 = vpop.f32.mrb[0].mxu0
        %v447 = vadd.f32 0.0, %v446
        %v448 = vpop.f32.mrb[0].mxu0
        %449 = vdwg.mxu0
        %v450 = vsel %vm328, %v444, -inf
        %451 = vmax.xlane.f32.xlu0 %v450
        %v452 = vpop.xlane.xlu0 %451
        %v453 = vsel %vm328, %v447, -inf
        %454 = vmax.xlane.f32.xlu0 %v453
        %v455 = vpop.xlane.xlu0 %454
        %v456 = vsub.f32 %v444, %v452
        %v457 = vsub.f32 %v447, %v455
        %v458 = vmul.f32 %v456, 1.442695
        %v459 = vpow.pop %v458
        %v460 = vmul.f32 %v457, 1.442695
        %v461 = vpow.pop %v460
        %v462 = vsel %vm328, %v459, 0.0
        %463 = vadd.xlane.f32.xlu0 %v462
        %v464 = vpop.xlane.xlu0 %463
        %v465 = vsel %vm328, %v461, 0.0
        %466 = vadd.xlane.f32.xlu0 %v465
        %v467 = vpop.xlane.xlu0 %466
        %v468 = vrcp.pop %v464
        %v469 = vrcp.pop %v467
        %v470 = vmul.f32 %v459, %v468
        %v471 = vmul.f32 %v461, %v469
        %v472 = vpack.c.bf16 %v471, %v470
        %473 = vrot.lane.b32.xlu0 %v276, 56
        %v474 = vpop.permute.xlu0 %473
        %v477 = vsel %vm328, %v472, 0
        %479 = vmatprep.subr.bf16.mxu0 0
        %480 = vmatpush1.bf16.msra.mxu0 %v474
        %481 = vmatprep.subr.bf16.mxu0 0
        %482 = vmatpush1.bf16.msra.mxu0 0
        %483 = vmatprep.subr.bf16.mxu0 0
        %484 = vmatpush1.bf16.msra.mxu0 0
        %485 = vmatprep.subr.bf16.mxu0 0
        %486 = vmatpush1.bf16.msra.mxu0 0
        %487 = vmatprep.subr.bf16.mxu0 0
        %488 = vmatpush1.bf16.msra.mxu0 0
        %489 = vmatprep.subr.bf16.mxu0 0
        %490 = vmatpush1.bf16.msra.mxu0 0
        %491 = vmatprep.subr.bf16.mxu0 0
        %492 = vmatpush1.bf16.msra.mxu0 0
        %493 = vmatprep.subr.bf16.mxu0 0
        %494 = vmatpush1.bf16.msra.mxu0 0
        %495 = vmatprep.subr.bf16.mxu0 0
        %496 = vmatpush1.bf16.msra.mxu0 0
        %497 = vmatprep.subr.bf16.mxu0 0
        %498 = vmatpush1.bf16.msra.mxu0 0
        %499 = vmatprep.subr.bf16.mxu0 0
        %500 = vmatpush1.bf16.msra.mxu0 0
        %501 = vmatprep.subr.bf16.mxu0 0
        %502 = vmatpush1.bf16.msra.mxu0 0
        %503 = vmatprep.subr.bf16.mxu0 0
        %504 = vmatpush1.bf16.msra.mxu0 0
        %505 = vmatprep.subr.bf16.mxu0 0
        %506 = vmatpush1.bf16.msra.mxu0 0
        %507 = vmatprep.subr.bf16.mxu0 0
        %508 = vmatpush1.bf16.msra.mxu0 0
        %509 = vmatprep.subr.bf16.mxu0 0
        %510 = vmatpush1.bf16.msra.mxu0 0
        %511 = vmatprep.mubr.bf16.mxu0 0
        %512 = vmatmul.mubr.bf16.gmra.mrb[0].mxu0 %v477
        %v513 = vpop.f32.mrb[0].mxu0
        %v514 = vadd.f32 0.0, %v513
        %v515 = vpop.f32.mrb[0].mxu0
        %v516 = vpop.f32.mrb[0].mxu0
        %v517 = vadd.f32 0.0, %v516
        %v518 = vpop.f32.mrb[0].mxu0
        %519 = vdwg.mxu0
        %520 = vrot.lane.b32.xlu0 %v276, 112
        %v521 = vpop.permute.xlu0 %520
        %522 = vrot.lane.b32.xlu0 %v276, 80
        %v523 = vpop.permute.xlu0 %522
        %v525 = vsel %vm280, %v521, 0
        %v528 = vsel %vm280, %v523, 0
        %530 = vmatprep.subr.bf16.mxu0 0
        %531 = vmatpush1.bf16.xpose.msra.mxu0 %v528
        %532 = vmatprep.subr.bf16.mxu0 0
        %533 = vmatpush1.bf16.xpose.msra.mxu0 0
        %534 = vmatprep.subr.bf16.mxu0 0
        %535 = vmatpush1.bf16.xpose.msra.mxu0 0
        %536 = vmatprep.subr.bf16.mxu0 0
        %537 = vmatpush1.bf16.xpose.msra.mxu0 0
        %538 = vmatprep.subr.bf16.mxu0 0
        %539 = vmatpush1.bf16.xpose.msra.mxu0 0
        %540 = vmatprep.subr.bf16.mxu0 0
        %541 = vmatpush1.bf16.xpose.msra.mxu0 0
        %542 = vmatprep.subr.bf16.mxu0 0
        %543 = vmatpush1.bf16.xpose.msra.mxu0 0
        %544 = vmatprep.subr.bf16.mxu0 0
        %545 = vmatpush1.bf16.xpose.msra.mxu0 0
        %546 = vmatprep.subr.bf16.mxu0 0
        %547 = vmatpush1.bf16.xpose.msra.mxu0 0
        %548 = vmatprep.subr.bf16.mxu0 0
        %549 = vmatpush1.bf16.xpose.msra.mxu0 0
        %550 = vmatprep.subr.bf16.mxu0 0
        %551 = vmatpush1.bf16.xpose.msra.mxu0 0
        %552 = vmatprep.subr.bf16.mxu0 0
        %553 = vmatpush1.bf16.xpose.msra.mxu0 0
        %554 = vmatprep.subr.bf16.mxu0 0
        %555 = vmatpush1.bf16.xpose.msra.mxu0 0
        %556 = vmatprep.subr.bf16.mxu0 0
        %557 = vmatpush1.bf16.xpose.msra.mxu0 0
        %558 = vmatprep.subr.bf16.mxu0 0
        %559 = vmatpush1.bf16.xpose.msra.mxu0 0
        %560 = vmatprep.subr.bf16.mxu0 0
        %561 = vmatpush1.bf16.xpose.msra.mxu0 0
        %562 = vmatprep.mubr.bf16.mxu0 0
        %563 = vmatmul.mubr.bf16.gmra.mrb[0].mxu0 %v525
        %v564 = vpop.f32.mrb[0].mxu0
        %v565 = vadd.f32 0.0, %v564
        %v566 = vpop.f32.mrb[0].mxu0
        %v567 = vpop.f32.mrb[0].mxu0
        %v568 = vadd.f32 0.0, %v567
        %v569 = vpop.f32.mrb[0].mxu0
        %570 = vdwg.mxu0
        %v571 = vsel %vm328, %v565, -inf
        %572 = vmax.xlane.f32.xlu0 %v571
        %v573 = vpop.xlane.xlu0 %572
        %v574 = vsel %vm328, %v568, -inf
        %575 = vmax.xlane.f32.xlu0 %v574
        %v576 = vpop.xlane.xlu0 %575
        %v577 = vsub.f32 %v565, %v573
        %v578 = vsub.f32 %v568, %v576
        %v579 = vmul.f32 %v577, 1.442695
        %v580 = vpow.pop %v579
        %v581 = vmul.f32 %v578, 1.442695
        %v582 = vpow.pop %v581
        %v583 = vsel %vm328, %v580, 0.0
        %584 = vadd.xlane.f32.xlu0 %v583
        %v585 = vpop.xlane.xlu0 %584
        %v586 = vsel %vm328, %v582, 0.0
        %587 = vadd.xlane.f32.xlu0 %v586
        %v588 = vpop.xlane.xlu0 %587
        %v589 = vrcp.pop %v585
        %v590 = vrcp.pop %v588
        %v591 = vmul.f32 %v580, %v589
        %v592 = vmul.f32 %v582, %v590
        %v593 = vpack.c.bf16 %v592, %v591
        %594 = vrot.lane.b32.xlu0 %v276, 48
        %v595 = vpop.permute.xlu0 %594
        %v598 = vsel %vm328, %v593, 0
        %600 = vmatprep.subr.bf16.mxu0 0
        %601 = vmatpush1.bf16.msra.mxu0 %v595
        %602 = vmatprep.subr.bf16.mxu0 0
        %603 = vmatpush1.bf16.msra.mxu0 0
        %604 = vmatprep.subr.bf16.mxu0 0
        %605 = vmatpush1.bf16.msra.mxu0 0
        %606 = vmatprep.subr.bf16.mxu0 0
        %607 = vmatpush1.bf16.msra.mxu0 0
        %608 = vmatprep.subr.bf16.mxu0 0
        %609 = vmatpush1.bf16.msra.mxu0 0
        %610 = vmatprep.subr.bf16.mxu0 0
        %611 = vmatpush1.bf16.msra.mxu0 0
        %612 = vmatprep.subr.bf16.mxu0 0
        %613 = vmatpush1.bf16.msra.mxu0 0
        %614 = vmatprep.subr.bf16.mxu0 0
        %615 = vmatpush1.bf16.msra.mxu0 0
        %616 = vmatprep.subr.bf16.mxu0 0
        %617 = vmatpush1.bf16.msra.mxu0 0
        %618 = vmatprep.subr.bf16.mxu0 0
        %619 = vmatpush1.bf16.msra.mxu0 0
        %620 = vmatprep.subr.bf16.mxu0 0
        %621 = vmatpush1.bf16.msra.mxu0 0
        %622 = vmatprep.subr.bf16.mxu0 0
        %623 = vmatpush1.bf16.msra.mxu0 0
        %624 = vmatprep.subr.bf16.mxu0 0
        %625 = vmatpush1.bf16.msra.mxu0 0
        %626 = vmatprep.subr.bf16.mxu0 0
        %627 = vmatpush1.bf16.msra.mxu0 0
        %628 = vmatprep.subr.bf16.mxu0 0
        %629 = vmatpush1.bf16.msra.mxu0 0
        %630 = vmatprep.subr.bf16.mxu0 0
        %631 = vmatpush1.bf16.msra.mxu0 0
        %632 = vmatprep.mubr.bf16.mxu0 0
        %633 = vmatmul.mubr.bf16.gmra.mrb[0].mxu0 %v598
        %v634 = vpop.f32.mrb[0].mxu0
        %v635 = vadd.f32 0.0, %v634
        %v636 = vpop.f32.mrb[0].mxu0
        %v637 = vpop.f32.mrb[0].mxu0
        %v638 = vadd.f32 0.0, %v637
        %v639 = vpop.f32.mrb[0].mxu0
        %640 = vdwg.mxu0
        %641 = vrot.lane.b32.xlu0 %v276, 104
        %v642 = vpop.permute.xlu0 %641
        %643 = vrot.lane.b32.xlu0 %v276, 72
        %v644 = vpop.permute.xlu0 %643
        %v646 = vsel %vm280, %v642, 0
        %v649 = vsel %vm280, %v644, 0
        %651 = vmatprep.subr.bf16.mxu0 0
        %652 = vmatpush1.bf16.xpose.msra.mxu0 %v649
        %653 = vmatprep.subr.bf16.mxu0 0
        %654 = vmatpush1.bf16.xpose.msra.mxu0 0
        %655 = vmatprep.subr.bf16.mxu0 0
        %656 = vmatpush1.bf16.xpose.msra.mxu0 0
        %657 = vmatprep.subr.bf16.mxu0 0
        %658 = vmatpush1.bf16.xpose.msra.mxu0 0
        %659 = vmatprep.subr.bf16.mxu0 0
        %660 = vmatpush1.bf16.xpose.msra.mxu0 0
        %661 = vmatprep.subr.bf16.mxu0 0
        %662 = vmatpush1.bf16.xpose.msra.mxu0 0
        %663 = vmatprep.subr.bf16.mxu0 0
        %664 = vmatpush1.bf16.xpose.msra.mxu0 0
        %665 = vmatprep.subr.bf16.mxu0 0
        %666 = vmatpush1.bf16.xpose.msra.mxu0 0
        %667 = vmatprep.subr.bf16.mxu0 0
        %668 = vmatpush1.bf16.xpose.msra.mxu0 0
        %669 = vmatprep.subr.bf16.mxu0 0
        %670 = vmatpush1.bf16.xpose.msra.mxu0 0
        %671 = vmatprep.subr.bf16.mxu0 0
        %672 = vmatpush1.bf16.xpose.msra.mxu0 0
        %673 = vmatprep.subr.bf16.mxu0 0
        %674 = vmatpush1.bf16.xpose.msra.mxu0 0
        %675 = vmatprep.subr.bf16.mxu0 0
        %676 = vmatpush1.bf16.xpose.msra.mxu0 0
        %677 = vmatprep.subr.bf16.mxu0 0
        %678 = vmatpush1.bf16.xpose.msra.mxu0 0
        %679 = vmatprep.subr.bf16.mxu0 0
        %680 = vmatpush1.bf16.xpose.msra.mxu0 0
        %681 = vmatprep.subr.bf16.mxu0 0
        %682 = vmatpush1.bf16.xpose.msra.mxu0 0
        %683 = vmatprep.mubr.bf16.mxu0 0
        %684 = vmatmul.mubr.bf16.gmra.mrb[0].mxu0 %v646
        %v685 = vpop.f32.mrb[0].mxu0
        %v686 = vadd.f32 0.0, %v685
        %v687 = vpop.f32.mrb[0].mxu0
        %v688 = vpop.f32.mrb[0].mxu0
        %v689 = vadd.f32 0.0, %v688
        %v690 = vpop.f32.mrb[0].mxu0
        %691 = vdwg.mxu0
        %v692 = vsel %vm328, %v686, -inf
        %693 = vmax.xlane.f32.xlu0 %v692
        %v694 = vpop.xlane.xlu0 %693
        %v695 = vsel %vm328, %v689, -inf
        %696 = vmax.xlane.f32.xlu0 %v695
        %v697 = vpop.xlane.xlu0 %696
        %v698 = vsub.f32 %v686, %v694
        %v699 = vsub.f32 %v689, %v697
        %v700 = vmul.f32 %v698, 1.442695
        %v701 = vpow.pop %v700
        %v702 = vmul.f32 %v699, 1.442695
        %v703 = vpow.pop %v702
        %v704 = vsel %vm328, %v701, 0.0
        %705 = vadd.xlane.f32.xlu0 %v704
        %v706 = vpop.xlane.xlu0 %705
        %v707 = vsel %vm328, %v703, 0.0
        %708 = vadd.xlane.f32.xlu0 %v707
        %v709 = vpop.xlane.xlu0 %708
        %v710 = vrcp.pop %v706
        %v711 = vrcp.pop %v709
        %v712 = vmul.f32 %v701, %v710
        %v713 = vmul.f32 %v703, %v711
        %v714 = vpack.c.bf16 %v713, %v712
        %715 = vrot.lane.b32.xlu0 %v276, 40
        %v716 = vpop.permute.xlu0 %715
        %v719 = vsel %vm328, %v714, 0
        %721 = vmatprep.subr.bf16.mxu0 0
        %722 = vmatpush1.bf16.msra.mxu0 %v716
        %723 = vmatprep.subr.bf16.mxu0 0
        %724 = vmatpush1.bf16.msra.mxu0 0
        %725 = vmatprep.subr.bf16.mxu0 0
        %726 = vmatpush1.bf16.msra.mxu0 0
        %727 = vmatprep.subr.bf16.mxu0 0
        %728 = vmatpush1.bf16.msra.mxu0 0
        %729 = vmatprep.subr.bf16.mxu0 0
        %730 = vmatpush1.bf16.msra.mxu0 0
        %731 = vmatprep.subr.bf16.mxu0 0
        %732 = vmatpush1.bf16.msra.mxu0 0
        %733 = vmatprep.subr.bf16.mxu0 0
        %734 = vmatpush1.bf16.msra.mxu0 0
        %735 = vmatprep.subr.bf16.mxu0 0
        %736 = vmatpush1.bf16.msra.mxu0 0
        %737 = vmatprep.subr.bf16.mxu0 0
        %738 = vmatpush1.bf16.msra.mxu0 0
        %739 = vmatprep.subr.bf16.mxu0 0
        %740 = vmatpush1.bf16.msra.mxu0 0
        %741 = vmatprep.subr.bf16.mxu0 0
        %742 = vmatpush1.bf16.msra.mxu0 0
        %743 = vmatprep.subr.bf16.mxu0 0
        %744 = vmatpush1.bf16.msra.mxu0 0
        %745 = vmatprep.subr.bf16.mxu0 0
        %746 = vmatpush1.bf16.msra.mxu0 0
        %747 = vmatprep.subr.bf16.mxu0 0
        %748 = vmatpush1.bf16.msra.mxu0 0
        %749 = vmatprep.subr.bf16.mxu0 0
        %750 = vmatpush1.bf16.msra.mxu0 0
        %751 = vmatprep.subr.bf16.mxu0 0
        %752 = vmatpush1.bf16.msra.mxu0 0
        %753 = vmatprep.mubr.bf16.mxu0 0
        %754 = vmatmul.mubr.bf16.gmra.mrb[0].mxu0 %v719
        %v755 = vpop.f32.mrb[0].mxu0
        %v756 = vadd.f32 0.0, %v755
        %v757 = vpop.f32.mrb[0].mxu0
        %v758 = vpop.f32.mrb[0].mxu0
        %v759 = vadd.f32 0.0, %v758
        %v760 = vpop.f32.mrb[0].mxu0
        %761 = vdwg.mxu0
        %764 = vrot.lane.b32.xlu0 %v514, 8
        %v765 = vpop.permute.xlu0 %764
        %766 = vrot.lane.b32.xlu0 %v517, 8
        %v767 = vpop.permute.xlu0 %766
        %772 = vrot.lane.b32.xlu0 %v635, 16
        %v773 = vpop.permute.xlu0 %772
        %774 = vrot.lane.b32.xlu0 %v638, 16
        %v775 = vpop.permute.xlu0 %774
        %780 = vrot.lane.b32.xlu0 %v756, 24
        %v781 = vpop.permute.xlu0 %780
        %782 = vrot.lane.b32.xlu0 %v759, 24
        %v783 = vpop.permute.xlu0 %782
        %v786 = vsel %vm280, %v393, %v765
        %v787 = vsel %vm280, %v396, %v767
        %v788 = vsel %vm328, %v786, %v773
        %v789 = vsel %vm328, %v787, %v775
        %vm790 = vcmask 195584
        %v791 = vsel %vm790, %v788, %v781
        %v792 = vsel %vm790, %v789, %v783
        %793 = vst.msk [vmem:[%s203] sm:$0xff] %vm231, %v791
        %794 = vst.msk [vmem:[%s203 + $0x8] sm:$0xff] %vm231, %v792
        %s795 = sand.u32 %s97, 1
        %s796 = scalar_lea.sflag [#allocation4], %s795
        %s797 = sand.u32 %s97, 1
        %s798 = smul.addr %s797, 16
        %s799 = scalar_lea.vmem [#allocation7], %s798
        // Predicated region
        $region41: #{tpu_custom_call.1} parent=31 // pred_check
          %p800 = pneg %p107
        $region42: #{tpu_custom_call.1} parent=31 // pred_check_branch
          %802 = sbr.rel (%p800) target = $region44
        $region43: #{tpu_custom_call.1} parent=31 // pred_region
          %s804 = ssub.s32 256, 256
          %805 = vsyncadd %s796, %s804
          %s806 = smul.addr %s21, 2
          %s807 = smul.addr %s806, 128
          %s808 = scalar_lea.hbm %s3, %s807
          %s809 = sshll.u32 %s799, 4
          %s810 = int_to_ptr.vmem [resolvable:$true] %s809
          %815 = dma.vmem_to_hbm [thread:$0]  %s810, 256, %s808, %s796, 128, 128, 8
        $region44: #{tpu_custom_call.1} parent=31 // pred_fallthru
          _
      $region32: #{tpu_custom_call.1} parent=5 // pred_fallthru
        _
      %p816 = scmp.le.s32.totalorder 2, %s16
      // Predicated region
      $region45: #{tpu_custom_call.1} parent=5 // pred_check
        %p817 = pneg %p816
      $region46: #{tpu_custom_call.1} parent=5 // pred_check_branch
        %819 = sbr.rel (%p817) target = $region48
      $region47: #{tpu_custom_call.1} parent=5 // pred_region
        %s820 = ssub.s32 %s16, 2
        // Predicated region
        $region49: #{tpu_custom_call.1} parent=47 // pred_check
          %p821 = pneg %p113
        $region50: #{tpu_custom_call.1} parent=47 // pred_check_branch
          %823 = sbr.rel (%p821) target = $region52
        $region51: #{tpu_custom_call.1} parent=47 // pred_region
          %s824 = sand.u32 %s98, 1
          %s825 = scalar_lea.sflag [#allocation4], %s824
          %s826 = sand.u32 %s98, 1
          %s827 = smul.addr %s826, 16
          %s828 = scalar_lea.vmem [#allocation7], %s827
          %829 = dma.done %s825, 256
        $region52: #{tpu_custom_call.1} parent=47 // pred_fallthru
          _
      $region48: #{tpu_custom_call.1} parent=5 // pred_fallthru
        _
    $region6: #{tpu_custom_call.1} parent=1 // loop_footer
      %s20 = sadd.s32 1, %s16
    $region7: #{tpu_custom_call.1} parent=1 // loop_footer_branch
      %15 = sbr.rel target = $region3
    $region8: #{tpu_custom_call.1} parent=1 // loop_exit
      _
    %830 = vsyncpa [#allocation3], 1
    %s831 = scalar_lea.sflag [#allocation3], 1
    %832 = vsyncpa %s831, 1
    %833 = vsyncpa [#allocation6], 1
    %834 = vsyncpa [#allocation4], 1
    %s835 = scalar_lea.sflag [#allocation4], 1
    %836 = vsyncpa %s835, 1

</llo_original>
